<compile_context>
chip_gen: v7x
topology: tpu7x:2x2x1
jax: 0.10.0
libtpu: 0.0.40
codegen_flags: <defaults>
</compile_context>

<pallas_src>
import jax
import jax.numpy as jnp
from jax.experimental import pallas as pl
from jax.experimental.pallas import tpu as pltpu


def _round_up(x, m):
    return ((x + m - 1) // m) * m


def _make_kernel(hw_tile, hw_blocks_per_split, hw_total, need_tail_mask):
    """hw_tile / hw_blocks_per_split / hw_total are static Python ints."""

    def kernel(f_ref, m_ref, o_ref, acc_ref):
        # f_ref: (Nt, Ct, HWt)  m_ref: (Nt, 1, HWt)
        # o_ref: (1, Nt, Ct)    acc_ref: (Nt, Ct) f32 running max
        s = pl.program_id(0)      # HW split (TensorCore) index
        hw = pl.program_id(3)     # HW block index within this split

        @pl.when(hw == 0)
        def _init():
            acc_ref[...] = jnp.full(acc_ref.shape, -jnp.inf, acc_ref.dtype)

        # VPU: masked product in f32 (exact no-op cast for f32 inputs).
        prod = f_ref[...].astype(jnp.float32) * m_ref[...].astype(jnp.float32)

        if need_tail_mask:
            # Lanes >= valid belong to the HW tail (or to a fully
            # out-of-range block of the last split): force them to -inf so
            # they are neutral for the max.  `valid` may be <= 0.
            blk = s * hw_blocks_per_split + hw
            valid = hw_total - blk * hw_tile
            lane = jax.lax.broadcasted_iota(jnp.int32, (1, 1, hw_tile), 2)
            prod = jnp.where(lane < valid, prod, -jnp.inf)

        # One cross-lane (XLU) reduce per block, tiny elementwise running max.
        acc_ref[...] = jnp.maximum(acc_ref[...], jnp.max(prod, axis=-1))

        @pl.when(hw == hw_blocks_per_split - 1)
        def _finalize():
            o_ref[0] = acc_ref[...].astype(o_ref.dtype)

    return kernel


def aggregator_forward(features, mask):
    """features: (N, C, H, W), mask: (N, 1, H, W) -> (N, C)."""
    N, C, H, W = features.shape
    out_dtype = features.dtype

    # Empty-tensor branch of the PyTorch module (static in JAX).
    if features.size == 0:
        return jnp.zeros((0, C), dtype=out_dtype)

    HW = H * W
    f = features.reshape(N, C, HW)
    m = mask.reshape(N, 1, HW)
    if m.dtype != f.dtype:
        m = m.astype(f.dtype)   # mask is C-times smaller than features; cheap

    # ---- tile selection (respect the (8,128) rule: tile is a multiple of
    #      (8,128) on the last two dims OR equal to the full dim) ----
    LANE = 128
    n_tile = N if N <= 8 else 8
    c_tile = C if C <= 128 else 128
    n_blocks = pl.cdiv(N, n_tile)
    c_blocks = pl.cdiv(C, c_tile)

    # HW lanes per block: budget the f32 feature block at ~4 MiB so
    # double-buffered inputs + elementwise intermediates fit comfortably in
    # every generation's VMEM, clamped to [512, 8192] lanes.
    rows = n_tile * c_tile
    max_lanes = (4 * 1024 * 1024) // (rows * 4)
    max_lanes = max(4 * LANE, min(8192, max_lanes))
    max_lanes = (max_lanes // LANE) * LANE

    if HW <= max_lanes:
        hw_tile = HW                      # full spatial extent (allowed)
    else:
        # Balance block sizes so the tail block is never mostly padding.
        nblk = pl.cdiv(HW, max_lanes)
        hw_tile = _round_up(pl.cdiv(HW, nblk), LANE)
    num_hw_blocks = pl.cdiv(HW, hw_tile)

    # When the (N x C) parallel grid is 1x1, split the HW reduction in two
    # so both TensorCores (v7x) / megacore halves get work; partial maxima
    # are combined with one tiny jnp.maximum outside the kernel.
    hw_splits = 2 if (n_blocks * c_blocks == 1 and num_hw_blocks >= 2) else 1
    hwbps = pl.cdiv(num_hw_blocks, hw_splits)   # HW blocks per split

    # Tail masking is needed if any processed block contains lanes >= HW
    # (partial last block or a fully out-of-range block of the last split).
    need_tail_mask = (hw_splits * hwbps * hw_tile) != HW

    if hw_splits * hwbps == num_hw_blocks:
        hw_block = lambda s, h: s * hwbps + h
    else:
        # Last split may overshoot: clamp the block index (the kernel masks
        # the whole block to -inf via `valid <= 0`).
        hw_block = lambda s, h: jnp.minimum(s * hwbps + h, num_hw_blocks - 1)

    grid = (hw_splits, n_blocks, c_blocks, hwbps)
    kernel = _make_kernel(hw_tile, hwbps, HW, need_tail_mask)

    cost = pl.CostEstimate(
        flops=2 * N * C * HW,
        transcendentals=0,
        bytes_accessed=(N * C * HW * f.dtype.itemsize            # features once
                        + c_blocks * N * HW * m.dtype.itemsize   # mask per C block
                        + hw_splits * N * C * out_dtype.itemsize),
    )

    partials = pl.pallas_call(
        kernel,
        out_shape=jax.ShapeDtypeStruct((hw_splits, N, C), out_dtype),
        grid_spec=pltpu.PrefetchScalarGridSpec(
            num_scalar_prefetch=0,
            grid=grid,
            in_specs=[
                pl.BlockSpec((n_tile, c_tile, hw_tile),
                             lambda s, n, c, h: (n, c, hw_block(s, h))),
                # mask has a single channel; its index ignores the C axis
                pl.BlockSpec((n_tile, 1, hw_tile),
                             lambda s, n, c, h: (n, 0, hw_block(s, h))),
            ],
            out_specs=pl.BlockSpec((1, n_tile, c_tile),
                                   lambda s, n, c, h: (s, n, c)),
            scratch_shapes=[pltpu.VMEM((n_tile, c_tile), jnp.float32)],
        ),
        compiler_params=pltpu.CompilerParams(
            dimension_semantics=("parallel", "parallel", "parallel", "arbitrary"),
            vmem_limit_bytes=48 * 1024 * 1024,
        ),
        cost_estimate=cost,
    )(f, m)

    if hw_splits == 1:
        return partials[0]
    return jnp.max(partials, axis=0)


def aggregator_reference(features, mask):
    # Pure-JAX reference of the PyTorch forward.
    return jnp.max(features * mask, axis=(2, 3))


if __name__ == "__main__":
    key = jax.random.PRNGKey(0)

    # 1) Small shapes from the module spec: single block, no tail, no split.
    k1, k2, key = jax.random.split(key, 3)
    f1 = jax.random.normal(k1, (2, 4, 16, 16), dtype=jnp.float32)
    m1 = (jax.random.uniform(k2, (2, 1, 16, 16)) > 0.5).astype(jnp.float32)
    o1 = jax.block_until_ready(aggregator_forward(f1, m1))
    r1 = aggregator_reference(f1, m1)
    assert o1.shape == (2, 4)
    assert jnp.allclose(o1, r1, atol=1e-6), "mismatch vs reference (small)"

    # 2) Multiple HW blocks + partial tail + 2-way HW split (both cores).
    k1, k2, key = jax.random.split(key, 3)
    f2 = jax.random.normal(k1, (2, 4, 96, 97), dtype=jnp.float32)
    m2 = (jax.random.uniform(k2, (2, 1, 96, 97)) > 0.3).astype(jnp.float32)
    o2 = jax.block_until_ready(aggregator_forward(f2, m2))
    r2 = aggregator_reference(f2, m2)
    assert o2.shape == (2, 4)
    assert jnp.allclose(o2, r2, atol=1e-6), "mismatch vs reference (hw split)"

    # 3) Partial N / C boundary blocks (N > 8, C > 128, neither divisible).
    k1, k2, key = jax.random.split(key, 3)
    f3 = jax.random.normal(k1, (9, 130, 10, 13), dtype=jnp.float32)
    m3 = (jax.random.uniform(k2, (9, 1, 10, 13)) > 0.5).astype(jnp.float32)
    o3 = jax.block_until_ready(aggregator_forward(f3, m3))
    r3 = aggregator_reference(f3, m3)
    assert o3.shape == (9, 130)
    assert jnp.allclose(o3, r3, atol=1e-6), "mismatch vs reference (N/C tiles)"

    print("KERNEL_OK")
</pallas_src>

<mosaic_0001>
module attributes {stable_mosaic.version = 11 : i64} {
  func.func @kernel(%arg0: i32, %arg1: i32, %arg2: i32, %arg3: i32, %arg4: memref<2x4x256xf32, #tpu.memory_space<vmem>>, %arg5: memref<2x1x256xf32, #tpu.memory_space<vmem>>, %arg6: memref<1x2x4xf32, #tpu.memory_space<vmem>>, %arg7: memref<2x4xf32, #tpu.memory_space<vmem>>) attributes {dimension_semantics = [#tpu.dimension_semantics<parallel>, #tpu.dimension_semantics<parallel>, #tpu.dimension_semantics<parallel>, #tpu.dimension_semantics<arbitrary>], iteration_bounds = array<i64: 1, 1, 1, 1>, scalar_prefetch = 0 : i64, scratch_operands = 1 : i64, tpu.core_type = #tpu.core_type<tc>, window_params = [{transform_indices = @transform_0, window_bounds = array<i64: 2, 4, 256>}, {transform_indices = @transform_1, window_bounds = array<i64: 2, 1, 256>}, {transform_indices = @transform_2, window_bounds = array<i64: 1, 2, 4>}]} {
    %c0_i32 = arith.constant 0 : i32
    %0 = arith.cmpi eq, %arg3, %c0_i32 : i32
    %1 = arith.extui %0 : i1 to i32
    %c0_i32_0 = arith.constant 0 : i32
    %2 = arith.cmpi ne, %1, %c0_i32_0 : i32
    scf.if %2 {
      %cst_12 = arith.constant 0xFF800000 : f32
      %14 = vector.broadcast %cst_12 : f32 to vector<2x4xf32>
      %c0_13 = arith.constant 0 : index
      %c0_14 = arith.constant 0 : index
      %15 = vector.load %arg7[%c0_13, %c0_14] : memref<2x4xf32, #tpu.memory_space<vmem>>, vector<2x4xf32>
      tpu.vector_store %arg7[%c0_13, %c0_14], %14 {strides = array<i32>} : memref<2x4xf32, #tpu.memory_space<vmem>>, vector<2x4xf32>,
    } else {
    }
    %c0 = arith.constant 0 : index
    %c0_1 = arith.constant 0 : index
    %c0_2 = arith.constant 0 : index
    %3 = vector.load %arg4[%c0, %c0_1, %c0_2] : memref<2x4x256xf32, #tpu.memory_space<vmem>>, vector<2x4x256xf32>
    %c0_3 = arith.constant 0 : index
    %c0_4 = arith.constant 0 : index
    %c0_5 = arith.constant 0 : index
    %4 = vector.load %arg5[%c0_3, %c0_4, %c0_5] : memref<2x1x256xf32, #tpu.memory_space<vmem>>, vector<2x1x256xf32>
    %5 = vector.broadcast %4 : vector<2x1x256xf32> to vector<2x4x256xf32>
    %6 = arith.mulf %3, %5 : vector<2x4x256xf32>
    %c0_6 = arith.constant 0 : index
    %c0_7 = arith.constant 0 : index
    %7 = vector.load %arg7[%c0_6, %c0_7] : memref<2x4xf32, #tpu.memory_space<vmem>>, vector<2x4xf32>
    %cst = arith.constant dense<0xFF800000> : vector<2x4xf32>
    %8 = vector.multi_reduction <maximumf>, %6, %cst [2] : vector<2x4x256xf32> to vector<2x4xf32>
    %9 = arith.maximumf %7, %8 : vector<2x4xf32>
    %c0_8 = arith.constant 0 : index
    %c0_9 = arith.constant 0 : index
    %10 = vector.load %arg7[%c0_8, %c0_9] : memref<2x4xf32, #tpu.memory_space<vmem>>, vector<2x4xf32>
    tpu.vector_store %arg7[%c0_8, %c0_9], %9 {strides = array<i32>} : memref<2x4xf32, #tpu.memory_space<vmem>>, vector<2x4xf32>,
    %c0_i32_10 = arith.constant 0 : i32
    %11 = arith.cmpi eq, %arg3, %c0_i32_10 : i32
    %12 = arith.extui %11 : i1 to i32
    %c0_i32_11 = arith.constant 0 : i32
    %13 = arith.cmpi ne, %12, %c0_i32_11 : i32
    scf.if %13 {
      %c0_12 = arith.constant 0 : index
      %c0_13 = arith.constant 0 : index
      %14 = vector.load %arg7[%c0_12, %c0_13] : memref<2x4xf32, #tpu.memory_space<vmem>>, vector<2x4xf32>
      %c0_14 = arith.constant 0 : index
      %c0_15 = arith.constant 0 : index
      %c0_16 = arith.constant 0 : index
      %15 = vector.load %arg6[%c0_14, %c0_15, %c0_16] : memref<1x2x4xf32, #tpu.memory_space<vmem>>, vector<1x2x4xf32>
      %16 = vector.shape_cast %15 : vector<1x2x4xf32> to vector<2x4xf32>
      %17 = vector.shape_cast %14 : vector<2x4xf32> to vector<1x2x4xf32>
      tpu.vector_store %arg6[%c0_14, %c0_15, %c0_16], %17 {strides = array<i32>} : memref<1x2x4xf32, #tpu.memory_space<vmem>>, vector<1x2x4xf32>,
    } else {
    }
    return
  }
  func.func @transform_0(%arg0: i32, %arg1: i32, %arg2: i32, %arg3: i32) -> (i32, i32, i32) {
    %c1_i32 = arith.constant 1 : i32
    %0 = arith.muli %arg0, %c1_i32 : i32
    %1 = arith.addi %0, %arg3 : i32
    %c0_i32 = arith.constant 0 : i32
    return %arg1, %arg2, %1 : i32, i32, i32
  }
  func.func @transform_1(%arg0: i32, %arg1: i32, %arg2: i32, %arg3: i32) -> (i32, i32, i32) {
    %c1_i32 = arith.constant 1 : i32
    %0 = arith.muli %arg0, %c1_i32 : i32
    %1 = arith.addi %0, %arg3 : i32
    %c0_i32 = arith.constant 0 : i32
    %c0_i32_0 = arith.constant 0 : i32
    return %arg1, %c0_i32, %1 : i32, i32, i32
  }
  func.func @transform_2(%arg0: i32, %arg1: i32, %arg2: i32, %arg3: i32) -> (i32, i32, i32) {
    %c0_i32 = arith.constant 0 : i32
    return %arg0, %arg1, %arg2 : i32, i32, i32
  }
}

</mosaic_0001>

<llo_original>
// kernel: tpu_custom_call.1
$region0: #{tpu_custom_call.1}
  #allocation0 [shape = 'u32[]', space=smem, size = 0x4, offset = 0x4, fixed_abs, tag = 'smem constant byte address 0x4 - core index']
  #allocation1 [shape = 'u32[144,128]{1,0:T(1,128)}', space=vmem, size = 0x12000, scoped, tag = 'internal scratch']
  #allocation2 [shape = 'f32[2,4]{1,0:T(2,128)}', space=vmem, size = 0x400, scoped, tag = 'scratch operand']
  %s0 = inlined_call_operand.hbm [shape: f32[2,4,256], index: 0, kind: input, shape index: {}]
  %s1 = inlined_call_operand.hbm [shape: f32[2,1,256], index: 1, kind: input, shape index: {}]
  %s2 = inlined_call_operand.hbm [shape: f32[1,2,4], index: 2, kind: output, shape index: {}]
  %s3 = sld [smem:[#allocation0]]
  $region34: #{tpu_custom_call.1} parent=0
    _
  %s5 = ssub.s32 1, %s3
  %s6 = scalar_select 0, %s5, %s3
  $region1: #{tpu_custom_call.1} parent=0
    #allocation3 [shape = 'u8[8192]{0}', space=vmem, size = 0x2000, scoped, tag = 'input window, operand 0, single buffered']
    #allocation4 [shape = 's32[1]{0}', space=sflag, size = 0x4, scoped, tag = 'scoped memory for tpu_custom_call.1']
    #allocation5 [shape = 's32[1]{0}', space=sflag, size = 0x4, scoped, tag = 'scoped memory for tpu_custom_call.1']
    #allocation6 [shape = 'u8[2048]{0}', space=vmem, size = 0x800, scoped, tag = 'input window, operand 1, single buffered']
    #allocation7 [shape = 's32[1]{0}', space=sflag, size = 0x4, scoped, tag = 'scoped memory for tpu_custom_call.1']
    #allocation8 [shape = 'u8[1024]{0}', space=vmem, size = 0x400, scoped, tag = 'output window, operand 0, single buffered']
    %7 = vsyncpa [#allocation4], 0
    %8 = vsyncpa [#allocation7], 0
    %9 = vsyncpa [#allocation5], 0
    // Predicated region
    $region2: #{tpu_custom_call.1} parent=1 // pred_check
      _
    $region3: #{tpu_custom_call.1} parent=1 // pred_check_branch
      %11 = sbr.rel (0) target = $region5
    $region4: #{tpu_custom_call.1} parent=1 // pred_region
      %s12 = sadd.s32 0, 0
      %s13 = smul.u32 2, %s12
      %s15 = ssub.s32 256, 256
      %16 = vsyncadd [#allocation4], %s15
      %s17 = smul.addr %s13, 64
      %s18 = scalar_lea.hbm %s0, %s17
      %s19 = sshll.u32 [#allocation3], 4
      %s20 = int_to_ptr.vmem [resolvable:$true] %s19
      %25 = dma.hbm_to_vmem [thread:$0]  %s18, 256, %s20, [#allocation4], 128, 128, 8
    $region5: #{tpu_custom_call.1} parent=1 // pred_fallthru
      _
    // Predicated region
    $region6: #{tpu_custom_call.1} parent=1 // pred_check
      _
    $region7: #{tpu_custom_call.1} parent=1 // pred_check_branch
      %27 = sbr.rel (0) target = $region9
    $region8: #{tpu_custom_call.1} parent=1 // pred_region
      %s28 = sadd.s32 0, 0
      %s29 = smul.u32 2, %s28
      %s31 = ssub.s32 64, 64
      %32 = vsyncadd [#allocation7], %s31
      %s33 = smul.addr %s29, 16
      %s34 = scalar_lea.hbm %s1, %s33
      %s35 = sshll.u32 [#allocation6], 4
      %s36 = int_to_ptr.vmem [resolvable:$true] %s35
      %41 = dma.hbm_to_vmem [thread:$0]  %s34, 64, %s36, [#allocation7], 32, 32, 2
    $region9: #{tpu_custom_call.1} parent=1 // pred_fallthru
      _
    // Predicated region
    $region10: #{tpu_custom_call.1} parent=1 // pred_check
      _
    $region11: #{tpu_custom_call.1} parent=1 // pred_check_branch
      %43 = sbr.rel (0) target = $region13
    $region12: #{tpu_custom_call.1} parent=1 // pred_region
      %44 = dma.done [#allocation4], 256
    $region13: #{tpu_custom_call.1} parent=1 // pred_fallthru
      _
    // Predicated region
    $region14: #{tpu_custom_call.1} parent=1 // pred_check
      _
    $region15: #{tpu_custom_call.1} parent=1 // pred_check_branch
      %46 = sbr.rel (0) target = $region17
    $region16: #{tpu_custom_call.1} parent=1 // pred_region
      %47 = dma.done [#allocation7], 64
    $region17: #{tpu_custom_call.1} parent=1 // pred_fallthru
      _
    %s48 = sadd.s32 0, 0
    %s49 = smul.u32 2, %s48
    %s50 = sadd.s32 0, 0
    %s51 = smul.u32 2, %s50
    %p52 = scmp.eq.s32.totalorder 0, 0
    // Predicated region
    $region18: #{tpu_custom_call.1} parent=1 // pred_check
      %p53 = pneg %p52
    $region19: #{tpu_custom_call.1} parent=1 // pred_check_branch
      %55 = sbr.rel (%p53) target = $region21
    $region20: #{tpu_custom_call.1} parent=1 // pred_region
      %vm56 = vcmask 25600
      %57 = vst.msk [vmem:[#allocation2] sm:$0x3] %vm56, -inf
    $region21: #{tpu_custom_call.1} parent=1 // pred_fallthru
      _
    %v58 = vld [vmem:[#allocation3] sm:$0xff]
    %v59 = vld [vmem:[#allocation3 + $0x8] sm:$0xff]
    %v60 = vld [vmem:[#allocation6] sm:$0x3]
    %v61 = vld [vmem:[#allocation6 + $0x2] sm:$0x3]
    %v64 = vlaneseq
    %v65 = vshrl.u32 %v64, 7
    %v66 = vsub.s32 0, %v65
    %v67 = vrot.slane %v60, %v66
    %v68 = vlaneseq
    %v69 = vshrl.u32 %v68, 7
    %v70 = vsub.s32 1, %v69
    %v71 = vrot.slane %v60, %v70
    %v72 = vlaneseq
    %v73 = vshrl.u32 %v72, 7
    %v74 = vsub.s32 0, %v73
    %v75 = vrot.slane %v61, %v74
    %v76 = vlaneseq
    %v77 = vshrl.u32 %v76, 7
    %v78 = vsub.s32 1, %v77
    %v79 = vrot.slane %v61, %v78
    %v80 = vcombine.low %v67, %v71
    %v81 = vcombine.low %v75, %v79
    %v84 = vmul.f32 %v58, %v80
    %v85 = vmul.f32 %v59, %v81
    %v86 = vld [vmem:[#allocation2] sm:$0x3]
    %v89 = vcombine.high %v84, %v84
    %v90 = vcombine.high %v85, %v85
    %vm93 = vcmask 1043456
    %v94 = vsel %vm93, %v84, -inf
    %v95 = vsel %vm93, %v89, -inf
    %v96 = vmax.f32 %v94, %v95
    %97 = vmax.xlane.f32.xlu0 %v96
    %v98 = vpop.xlane.xlu0 %97
    %v99 = vsel %vm93, %v85, -inf
    %v100 = vsel %vm93, %v90, -inf
    %v101 = vmax.f32 %v99, %v100
    %102 = vmax.xlane.f32.xlu0 %v101
    %v103 = vpop.xlane.xlu0 %102
    %v106 = vlaneseq
    %v107 = vand.u32 %v106, 127
    %v108 = vlaneseq
    %v109 = vshrl.u32 %v108, 7
    %v110 = vsub.s32 %v107, %v109
    %v111 = vrot.slane %v98, %v110
    %v112 = vlaneseq
    %v113 = vshrl.u32 %v112, 7
    %v114 = vsub.s32 %v107, %v113
    %v115 = vrot.slane %v103, %v114
    %vm116 = vcmask 1041409
    %v117 = vsel %vm116, %v115, %v111
    %v119 = vmax.f32 %v86, %v117
    %vm120 = vcmask 25600
    %121 = vst.msk [vmem:[#allocation2] sm:$0x3] %vm120, %v119
    // Predicated region
    $region22: #{tpu_custom_call.1} parent=1 // pred_check
      %p122 = pneg %p52
    $region23: #{tpu_custom_call.1} parent=1 // pred_check_branch
      %124 = sbr.rel (%p122) target = $region25
    $region24: #{tpu_custom_call.1} parent=1 // pred_region
      %v125 = vld [vmem:[#allocation2] sm:$0x3]
      %126 = vst.msk [vmem:[#allocation8] sm:$0x3] %vm120, %v125
    $region25: #{tpu_custom_call.1} parent=1 // pred_fallthru
      _
    // Predicated region
    $region26: #{tpu_custom_call.1} parent=1 // pred_check
      _
    $region27: #{tpu_custom_call.1} parent=1 // pred_check_branch
      %128 = sbr.rel (0) target = $region29
    $region28: #{tpu_custom_call.1} parent=1 // pred_region
      %s130 = ssub.s32 32, 32
      %131 = vsyncadd [#allocation5], %s130
      %s133 = sshll.u32 [#allocation8], 4
      %s134 = int_to_ptr.vmem [resolvable:$true] %s133
      %136 = dma.vmem_to_hbm [thread:$0]  %s134, 32, %s2, [#allocation5]
    $region29: #{tpu_custom_call.1} parent=1 // pred_fallthru
      _
    // Predicated region
    $region30: #{tpu_custom_call.1} parent=1 // pred_check
      _
    $region31: #{tpu_custom_call.1} parent=1 // pred_check_branch
      %138 = sbr.rel (0) target = $region33
    $region32: #{tpu_custom_call.1} parent=1 // pred_region
      %139 = dma.done [#allocation5], 32
    $region33: #{tpu_custom_call.1} parent=1 // pred_fallthru
      _
    %140 = vsyncpa [#allocation4], 1
    %141 = vsyncpa [#allocation7], 1
    %142 = vsyncpa [#allocation5], 1

</llo_original>
